<compile_context>
chip_gen: v6e
topology: v6e:2x2x1
jax: 0.10.0
libtpu: 0.0.40
codegen_flags: <defaults>
</compile_context>

<pallas_src>
import functools

import jax
import jax.numpy as jnp
from jax.experimental import pallas as pl
from jax.experimental.pallas import tpu as pltpu


def _round_up(n, m):
    return ((n + m - 1) // m) * m


def _pick_tf(ffn, tf_req):
    """Largest FFN tile <= tf_req that divides ffn (prefer multiples of 128)."""
    tf = min(tf_req, ffn)
    if ffn % tf == 0:
        return tf
    best = None
    d = 128
    while d <= tf:
        if ffn % d == 0:
            best = d
        d += 128
    return best if best is not None else ffn


def glm_mlp_kernel(x_ref, w_gate_ref, w_up_ref, w2_ref, o_ref, acc_ref):
    # x_ref:      (TM, H)      token tile (same across the ffn axis)
    # w_gate_ref: (H, TF)      gate column slab of merged dense_h_to_4h
    # w_up_ref:   (H, TF)      up   column slab of merged dense_h_to_4h
    # w2_ref:     (TF, H)      row slab of dense_4h_to_h
    # o_ref:      (TM, H)
    # acc_ref:    (TM, H) f32  VMEM accumulator, resident across the ffn axis
    f = pl.program_id(1)

    @pl.when(f == 0)
    def _():
        acc_ref[...] = jnp.zeros_like(acc_ref)

    x = x_ref[...]
    gate = jnp.dot(x, w_gate_ref[...], preferred_element_type=jnp.float32)
    up = jnp.dot(x, w_up_ref[...], preferred_element_type=jnp.float32)
    # SiluAndMul in f32 on the VPU/EUP.
    act = (gate * jax.nn.sigmoid(gate)) * up                    # (TM, TF) f32

    acc_ref[...] += jnp.dot(act.astype(w2_ref.dtype), w2_ref[...],
                            preferred_element_type=jnp.float32)  # (TM, H) f32

    @pl.when(f == pl.num_programs(1) - 1)
    def _():
        o_ref[...] = acc_ref[...].astype(o_ref.dtype)


@functools.partial(jax.jit, static_argnames=("tm", "tf"))
def glm_mlp(x, w_h_to_4h, w_4h_to_h, *, tm=256, tf=512):
    """x: [T, H]; w_h_to_4h: [H, 2*FFN] (merged [gate|up]); w_4h_to_h: [FFN, H]."""
    T, H = x.shape
    H2, two_ffn = w_h_to_4h.shape
    ffn, H3 = w_4h_to_h.shape
    assert H == H2 == H3 and two_ffn == 2 * ffn

    # Token tiling: keep a large MXU-friendly tile, pad T instead of shrinking it.
    tm = min(tm, _round_up(T, 8))
    t_pad = _round_up(T, tm)
    if t_pad != T:
        x = jnp.pad(x, ((0, t_pad - T), (0, 0)))

    # FFN (reduction / weight-streaming) tiling.
    tf = _pick_tf(ffn, tf)
    nf = ffn // tf

    grid = (t_pad // tm, nf)

    out = pl.pallas_call(
        glm_mlp_kernel,
        out_shape=jax.ShapeDtypeStruct((t_pad, H), x.dtype),
        grid_spec=pltpu.PrefetchScalarGridSpec(
            num_scalar_prefetch=0,
            grid=grid,
            in_specs=[
                # token tile of activations
                pl.BlockSpec((tm, H), lambda i, f: (i, 0)),
                # gate column slab of the merged W1 (columns [0, FFN))
                pl.BlockSpec((H, tf), lambda i, f: (0, f)),
                # up column slab of the merged W1 (columns [FFN, 2*FFN))
                pl.BlockSpec((H, tf), lambda i, f: (0, f + nf)),
                # W2 row slab
                pl.BlockSpec((tf, H), lambda i, f: (f, 0)),
            ],
            out_specs=pl.BlockSpec((tm, H), lambda i, f: (i, 0)),
            scratch_shapes=[pltpu.VMEM((tm, H), jnp.float32)],
        ),
        compiler_params=pltpu.CompilerParams(
            dimension_semantics=("parallel", "arbitrary"),
            vmem_limit_bytes=48 * 1024 * 1024,  # fits v7x's 64 MiB VMEM with headroom
        ),
    )(x, w_h_to_4h, w_h_to_4h, w_4h_to_h)  # merged W1 passed twice (gate / up views)

    if t_pad != T:
        out = out[:T]
    return out


def glm_mlp_ref(x, w_h_to_4h, w_4h_to_h):
    ffn = w_4h_to_h.shape[0]
    h4 = x.astype(jnp.float32) @ w_h_to_4h.astype(jnp.float32)
    gate, up = h4[:, :ffn], h4[:, ffn:]
    act = jax.nn.silu(gate) * up
    return (act @ w_4h_to_h.astype(jnp.float32)).astype(x.dtype)


if __name__ == "__main__":
    # Small config: hidden=128, ffn_hidden=512, tokens=20 (exercises token
    # padding and a 2-step FFN/accumulator axis with tf=256).
    T, H, FFN = 20, 128, 512
    key = jax.random.PRNGKey(0)
    k_x, k_w1, k_w2 = jax.random.split(key, 3)

    x = jax.random.normal(k_x, (T, H), dtype=jnp.float32)
    # dense_h_to_4h: MergedColumnParallelLinear(H, [FFN, FFN]) -> merged [H, 2*FFN]
    w_h_to_4h = jax.random.normal(k_w1, (H, 2 * FFN), dtype=jnp.float32) * 0.02
    # dense_4h_to_h: RowParallelLinear(FFN, H) -> [FFN, H]
    w_4h_to_h = jax.random.normal(k_w2, (FFN, H), dtype=jnp.float32) * 0.02

    out = glm_mlp(x, w_h_to_4h, w_4h_to_h, tm=256, tf=256)
    out = jax.block_until_ready(out)

    ref = glm_mlp_ref(x, w_h_to_4h, w_4h_to_h)
    assert out.shape == (T, H)
    assert jnp.allclose(out, ref, atol=1e-4, rtol=1e-4), "mismatch vs reference"

    print("KERNEL_OK")
</pallas_src>

<mosaic_0001>
module attributes {stable_mosaic.version = 11 : i64} {
  func.func @glm_mlp_kernel(%arg0: i32, %arg1: i32, %arg2: memref<24x128xf32, #tpu.memory_space<vmem>>, %arg3: memref<128x256xf32, #tpu.memory_space<vmem>>, %arg4: memref<128x256xf32, #tpu.memory_space<vmem>>, %arg5: memref<256x128xf32, #tpu.memory_space<vmem>>, %arg6: memref<24x128xf32, #tpu.memory_space<vmem>>, %arg7: memref<24x128xf32, #tpu.memory_space<vmem>>) attributes {dimension_semantics = [#tpu.dimension_semantics<parallel>, #tpu.dimension_semantics<arbitrary>], iteration_bounds = array<i64: 1, 2>, scalar_prefetch = 0 : i64, scratch_operands = 1 : i64, tpu.core_type = #tpu.core_type<tc>, window_params = [{transform_indices = @transform_0, window_bounds = array<i64: 24, 128>}, {transform_indices = @transform_1, window_bounds = array<i64: 128, 256>}, {transform_indices = @transform_2, window_bounds = array<i64: 128, 256>}, {transform_indices = @transform_3, window_bounds = array<i64: 256, 128>}, {transform_indices = @transform_4, window_bounds = array<i64: 24, 128>}]} {
    %c0_i32 = arith.constant 0 : i32
    %0 = arith.cmpi eq, %arg1, %c0_i32 : i32
    %1 = arith.extui %0 : i1 to i32
    %c0_i32_0 = arith.constant 0 : i32
    %2 = arith.cmpi ne, %1, %c0_i32_0 : i32
    scf.if %2 {
      %cst_16 = arith.constant 0.000000e+00 : f32
      %23 = vector.broadcast %cst_16 : f32 to vector<24x128xf32>
      %c0_17 = arith.constant 0 : index
      %c0_18 = arith.constant 0 : index
      %24 = vector.load %arg7[%c0_17, %c0_18] : memref<24x128xf32, #tpu.memory_space<vmem>>, vector<24x128xf32>
      tpu.vector_store %arg7[%c0_17, %c0_18], %23 {strides = array<i32>} : memref<24x128xf32, #tpu.memory_space<vmem>>, vector<24x128xf32>,
    } else {
    }
    %c0 = arith.constant 0 : index
    %c0_1 = arith.constant 0 : index
    %3 = vector.load %arg2[%c0, %c0_1] : memref<24x128xf32, #tpu.memory_space<vmem>>, vector<24x128xf32>
    %c0_2 = arith.constant 0 : index
    %c0_3 = arith.constant 0 : index
    %4 = vector.load %arg3[%c0_2, %c0_3] : memref<128x256xf32, #tpu.memory_space<vmem>>, vector<128x256xf32>
    %cst = arith.constant dense<0.000000e+00> : vector<24x256xf32>
    %5 = tpu.matmul %3, %4, %cst {dimension_numbers = #tpu.dot_dimension_numbers<[1], [0], [0], [1], [0, 0, 1, 1], [], []>} : vector<24x128xf32>, vector<128x256xf32>, vector<24x256xf32> -> vector<24x256xf32>
    %c0_4 = arith.constant 0 : index
    %c0_5 = arith.constant 0 : index
    %6 = vector.load %arg4[%c0_4, %c0_5] : memref<128x256xf32, #tpu.memory_space<vmem>>, vector<128x256xf32>
    %cst_6 = arith.constant dense<0.000000e+00> : vector<24x256xf32>
    %7 = tpu.matmul %3, %6, %cst_6 {dimension_numbers = #tpu.dot_dimension_numbers<[1], [0], [0], [1], [0, 0, 1, 1], [], []>} : vector<24x128xf32>, vector<128x256xf32>, vector<24x256xf32> -> vector<24x256xf32>
    %8 = arith.negf %5 : vector<24x256xf32>
    %9 = math.exp %8 : vector<24x256xf32>
    %cst_7 = arith.constant 1.000000e+00 : f32
    %10 = vector.broadcast %cst_7 : f32 to vector<24x256xf32>
    %11 = arith.addf %10, %9 : vector<24x256xf32>
    %12 = arith.divf %10, %11 : vector<24x256xf32>
    %13 = arith.mulf %5, %12 : vector<24x256xf32>
    %14 = arith.mulf %13, %7 : vector<24x256xf32>
    %c0_8 = arith.constant 0 : index
    %c0_9 = arith.constant 0 : index
    %15 = vector.load %arg7[%c0_8, %c0_9] : memref<24x128xf32, #tpu.memory_space<vmem>>, vector<24x128xf32>
    %c0_10 = arith.constant 0 : index
    %c0_11 = arith.constant 0 : index
    %16 = vector.load %arg5[%c0_10, %c0_11] : memref<256x128xf32, #tpu.memory_space<vmem>>, vector<256x128xf32>
    %cst_12 = arith.constant dense<0.000000e+00> : vector<24x128xf32>
    %17 = tpu.matmul %14, %16, %cst_12 {dimension_numbers = #tpu.dot_dimension_numbers<[1], [0], [0], [1], [0, 0, 1, 1], [], []>} : vector<24x256xf32>, vector<256x128xf32>, vector<24x128xf32> -> vector<24x128xf32>
    %18 = arith.addf %15, %17 : vector<24x128xf32>
    %c0_13 = arith.constant 0 : index
    %c0_14 = arith.constant 0 : index
    %19 = vector.load %arg7[%c0_13, %c0_14] : memref<24x128xf32, #tpu.memory_space<vmem>>, vector<24x128xf32>
    tpu.vector_store %arg7[%c0_13, %c0_14], %18 {strides = array<i32>} : memref<24x128xf32, #tpu.memory_space<vmem>>, vector<24x128xf32>,
    %c1_i32 = arith.constant 1 : i32
    %20 = arith.cmpi eq, %arg1, %c1_i32 : i32
    %21 = arith.extui %20 : i1 to i32
    %c0_i32_15 = arith.constant 0 : i32
    %22 = arith.cmpi ne, %21, %c0_i32_15 : i32
    scf.if %22 {
      %c0_16 = arith.constant 0 : index
      %c0_17 = arith.constant 0 : index
      %23 = vector.load %arg7[%c0_16, %c0_17] : memref<24x128xf32, #tpu.memory_space<vmem>>, vector<24x128xf32>
      %c0_18 = arith.constant 0 : index
      %c0_19 = arith.constant 0 : index
      %24 = vector.load %arg6[%c0_18, %c0_19] : memref<24x128xf32, #tpu.memory_space<vmem>>, vector<24x128xf32>
      tpu.vector_store %arg6[%c0_18, %c0_19], %23 {strides = array<i32>} : memref<24x128xf32, #tpu.memory_space<vmem>>, vector<24x128xf32>,
    } else {
    }
    return
  }
  func.func @transform_0(%arg0: i32, %arg1: i32) -> (i32, i32) {
    %c0_i32 = arith.constant 0 : i32
    %c0_i32_0 = arith.constant 0 : i32
    return %arg0, %c0_i32 : i32, i32
  }
  func.func @transform_1(%arg0: i32, %arg1: i32) -> (i32, i32) {
    %c0_i32 = arith.constant 0 : i32
    %c0_i32_0 = arith.constant 0 : i32
    return %c0_i32, %arg1 : i32, i32
  }
  func.func @transform_2(%arg0: i32, %arg1: i32) -> (i32, i32) {
    %c2_i32 = arith.constant 2 : i32
    %0 = arith.addi %arg1, %c2_i32 : i32
    %c0_i32 = arith.constant 0 : i32
    %c0_i32_0 = arith.constant 0 : i32
    return %c0_i32, %0 : i32, i32
  }
  func.func @transform_3(%arg0: i32, %arg1: i32) -> (i32, i32) {
    %c0_i32 = arith.constant 0 : i32
    %c0_i32_0 = arith.constant 0 : i32
    return %arg1, %c0_i32 : i32, i32
  }
  func.func @transform_4(%arg0: i32, %arg1: i32) -> (i32, i32) {
    %c0_i32 = arith.constant 0 : i32
    %c0_i32_0 = arith.constant 0 : i32
    return %arg0, %c0_i32 : i32, i32
  }
}

</mosaic_0001>

<llo_original>
// kernel: glm_mlp.1
$region0: #{glm_mlp.1}
  #allocation0 [shape = 'u32[]', space=smem, size = 0x4, offset = 0x4, fixed_abs, tag = 'smem constant byte address 0x4 - core index']
  #allocation1 [shape = 'u32[144,128]{1,0:T(1,128)}', space=vmem, size = 0x12000, scoped, tag = 'internal scratch']
  #allocation2 [shape = 'f32[24,128]{1,0:T(8,128)}', space=vmem, size = 0x3000, scoped, tag = 'scratch operand']
  %s0 = inlined_call_operand.vmem [shape: f32[24,128], index: 0, kind: input, shape index: {}]
  %s1 = inlined_call_operand.hbm [shape: f32[128,1024], index: 1, kind: input, shape index: {}, may-alias: {1,2}]
  %s2 = inlined_call_operand.hbm [shape: f32[128,1024], index: 2, kind: input, shape index: {}, may-alias: {1,2}]
  %s3 = inlined_call_operand.hbm [shape: f32[512,128], index: 3, kind: input, shape index: {}]
  %s4 = inlined_call_operand.hbm [shape: f32[24,128], index: 4, kind: output, shape index: {}]
  %s5 = sld [smem:[#allocation0]]
  $region69: #{glm_mlp.1} parent=0
    _
  %s7 = ssub.s32 1, %s5
  %s8 = scalar_select 0, %s7, %s5
  $region1: #{glm_mlp.1} parent=0
    #allocation3 [shape = 'u8[262144]{0}', space=vmem, size = 0x40000, scoped, tag = 'input window, operand 1']
    #allocation4 [shape = 's32[2]{0}', space=sflag, size = 0x8, scoped, tag = 'scoped memory for glm_mlp.1']
    #allocation5 [shape = 's32[2]{0}', space=sflag, size = 0x8, scoped, tag = 'scoped memory for glm_mlp.1']
    #allocation6 [shape = 'u8[262144]{0}', space=vmem, size = 0x40000, scoped, tag = 'input window, operand 2']
    #allocation7 [shape = 's32[2]{0}', space=sflag, size = 0x8, scoped, tag = 'scoped memory for glm_mlp.1']
    #allocation8 [shape = 'u8[262144]{0}', space=vmem, size = 0x40000, scoped, tag = 'input window, operand 3']
    #allocation9 [shape = 'u8[12288]{0}', space=vmem, size = 0x3000, scoped, tag = 'output window, operand 0, single buffered']
    %9 = vsyncpa [#allocation4], 0
    %s10 = scalar_lea.sflag [#allocation4], 1
    %11 = vsyncpa %s10, 0
    %12 = vsyncpa [#allocation7], 0
    %s13 = scalar_lea.sflag [#allocation7], 1
    %14 = vsyncpa %s13, 0
    %15 = vsyncpa [#allocation5], 0
    loop: start=0, step=1, limit=4
    $region2: #{glm_mlp.1} parent=1 // loop_pre_header
      _
    $region3: #{glm_mlp.1} parent=1 // loop_header
      %s17 = sphi 0, %s21
      %p18 = scmp.ge.s32.totalorder %s17, 4
      %s24 = sphi 0, %s36
      %s25 = sphi 0, %s32
      %s26 = sphi 0, %s24
      %s27 = sphi 0, %s25
      %s28 = sphi 0, %s26
      %s29 = sphi 0, %s27
      %s39 = sphi 0, %s41
      %s42 = sphi 0, %s39
      %s43 = sphi 0, %s42
      %s59 = sphi 0, %s43
      %s65 = sphi 0, %s67
      %s68 = sphi 0, %s65
      %s69 = sphi 0, %s68
      %s85 = sphi 0, %s69
      %s93 = sphi 0, %s95
      %s96 = sphi 0, %s93
      %s97 = sphi 0, %s96
      %s113 = sphi 0, %s97
      %s119 = sphi 0, %s121
      %s122 = sphi 0, %s119
      %s123 = sphi 0, %s122
      %s139 = sphi 0, %s123
      %s145 = sphi 0, %s147
      %s148 = sphi 0, %s145
      %s149 = sphi 0, %s148
      %s165 = sphi 0, %s149
    $region4: #{glm_mlp.1} parent=1 // loop_header_branch
      %20 = sbr.rel (%p18) target = $region8
    $region5: #{glm_mlp.1} parent=1 // loop_body
      %s22 = ssub.s32 %s17, 1
      %s23 = ssub.s32 %s17, 2
      %s30 = sadd.s32 1, %s25
      %p31 = scmp.ge.s32.totalorder %s30, 2
      %s32 = scalar_select %p31, 0, %s30
      %s33 = sadd.s32 1, %s24
      %s34 = scalar_select %p31, %s33, %s24
      %p35 = scmp.ge.s32.totalorder %s34, 1
      %s36 = scalar_select %p35, 0, %s34
      %s37 = ssub.s32 %s24, %s36
      %p38 = scmp.eq.s32.totalorder %s37, 0
      %s40 = sadd.s32 %s39, 1
      %s41 = scalar_select %p38, %s39, %s40
      %p44 = pneg %p38
      %p45 = scmp.eq.s32.totalorder %s17, 1
      %p46 = por %p44, %p45
      %p47 = scmp.ne.s32.totalorder %s39, %s42
      %p48 = scmp.eq.s32.totalorder %s17, 0
      %p49 = por %p47, %p48
      %p50 = scmp.ne.s32.totalorder %s39, %s42
      %p51 = scmp.eq.s32.totalorder %s22, 1
      %p52 = por %p50, %p51
      %p53 = scmp.ne.s32.totalorder %s42, %s43
      %p54 = scmp.eq.s32.totalorder %s22, 0
      %p55 = por %p53, %p54
      %p56 = scmp.ne.s32.totalorder %s42, %s43
      %p57 = scmp.eq.s32.totalorder %s23, 1
      %p58 = por %p56, %p57
      %p60 = scmp.ne.s32.totalorder %s43, %s59
      %p61 = scmp.eq.s32.totalorder %s23, 0
      %p62 = por %p60, %p61
      %s63 = ssub.s32 %s25, %s32
      %p64 = scmp.eq.s32.totalorder %s63, 0
      %s66 = sadd.s32 %s65, 1
      %s67 = scalar_select %p64, %s65, %s66
      %p70 = pneg %p64
      %p71 = scmp.eq.s32.totalorder %s17, 1
      %p72 = por %p70, %p71
      %p73 = scmp.ne.s32.totalorder %s65, %s68
      %p74 = scmp.eq.s32.totalorder %s17, 0
      %p75 = por %p73, %p74
      %p76 = scmp.ne.s32.totalorder %s65, %s68
      %p77 = scmp.eq.s32.totalorder %s22, 1
      %p78 = por %p76, %p77
      %p79 = scmp.ne.s32.totalorder %s68, %s69
      %p80 = scmp.eq.s32.totalorder %s22, 0
      %p81 = por %p79, %p80
      %p82 = scmp.ne.s32.totalorder %s68, %s69
      %p83 = scmp.eq.s32.totalorder %s23, 1
      %p84 = por %p82, %p83
      %p86 = scmp.ne.s32.totalorder %s69, %s85
      %p87 = scmp.eq.s32.totalorder %s23, 0
      %p88 = por %p86, %p87
      %s89 = sadd.s32 %s25, 2
      %s90 = sadd.s32 %s32, 2
      %s91 = ssub.s32 %s89, %s90
      %p92 = scmp.eq.s32.totalorder %s91, 0
      %s94 = sadd.s32 %s93, 1
      %s95 = scalar_select %p92, %s93, %s94
      %p98 = pneg %p92
      %p99 = scmp.eq.s32.totalorder %s17, 1
      %p100 = por %p98, %p99
      %p101 = scmp.ne.s32.totalorder %s93, %s96
      %p102 = scmp.eq.s32.totalorder %s17, 0
      %p103 = por %p101, %p102
      %p104 = scmp.ne.s32.totalorder %s93, %s96
      %p105 = scmp.eq.s32.totalorder %s22, 1
      %p106 = por %p104, %p105
      %p107 = scmp.ne.s32.totalorder %s96, %s97
      %p108 = scmp.eq.s32.totalorder %s22, 0
      %p109 = por %p107, %p108
      %p110 = scmp.ne.s32.totalorder %s96, %s97
      %p111 = scmp.eq.s32.totalorder %s23, 1
      %p112 = por %p110, %p111
      %p114 = scmp.ne.s32.totalorder %s97, %s113
      %p115 = scmp.eq.s32.totalorder %s23, 0
      %p116 = por %p114, %p115
      %s117 = ssub.s32 %s25, %s32
      %p118 = scmp.eq.s32.totalorder %s117, 0
      %s120 = sadd.s32 %s119, 1
      %s121 = scalar_select %p118, %s119, %s120
      %p124 = pneg %p118
      %p125 = scmp.eq.s32.totalorder %s17, 1
      %p126 = por %p124, %p125
      %p127 = scmp.ne.s32.totalorder %s119, %s122
      %p128 = scmp.eq.s32.totalorder %s17, 0
      %p129 = por %p127, %p128
      %p130 = scmp.ne.s32.totalorder %s119, %s122
      %p131 = scmp.eq.s32.totalorder %s22, 1
      %p132 = por %p130, %p131
      %p133 = scmp.ne.s32.totalorder %s122, %s123
      %p134 = scmp.eq.s32.totalorder %s22, 0
      %p135 = por %p133, %p134
      %p136 = scmp.ne.s32.totalorder %s122, %s123
      %p137 = scmp.eq.s32.totalorder %s23, 1
      %p138 = por %p136, %p137
      %p140 = scmp.ne.s32.totalorder %s123, %s139
      %p141 = scmp.eq.s32.totalorder %s23, 0
      %p142 = por %p140, %p141
      %s143 = ssub.s32 %s24, %s36
      %p144 = scmp.eq.s32.totalorder %s143, 0
      %s146 = sadd.s32 %s145, 1
      %s147 = scalar_select %p144, %s145, %s146
      %p150 = pneg %p144
      %p151 = scmp.eq.s32.totalorder %s17, 1
      %p152 = por %p150, %p151
      %p153 = scmp.ne.s32.totalorder %s145, %s148
      %p154 = scmp.eq.s32.totalorder %s17, 0
      %p155 = por %p153, %p154
      %p156 = scmp.ne.s32.totalorder %s145, %s148
      %p157 = scmp.eq.s32.totalorder %s22, 1
      %p158 = por %p156, %p157
      %p159 = scmp.ne.s32.totalorder %s148, %s149
      %p160 = scmp.eq.s32.totalorder %s22, 0
      %p161 = por %p159, %p160
      %p162 = scmp.ne.s32.totalorder %s148, %s149
      %p163 = scmp.eq.s32.totalorder %s23, 1
      %p164 = por %p162, %p163
      %p166 = scmp.ne.s32.totalorder %s149, %s165
      %p167 = scmp.eq.s32.totalorder %s23, 0
      %p168 = por %p166, %p167
      %p169 = scmp.le.s32.totalorder 1, %s17
      %p170 = scmp.lt.s32.totalorder %s17, 3
      %p171 = pnand %p169, %p170
      %p172 = pneg %p171
      // Predicated region
      $region9: #{glm_mlp.1} parent=5 // pred_check
        _
      $region10: #{glm_mlp.1} parent=5 // pred_check_branch
        %174 = sbr.rel (%p171) target = $region12
      $region11: #{glm_mlp.1} parent=5 // pred_region
        %s175 = ssub.s32 %s17, 1
        // Predicated region
        $region13: #{glm_mlp.1} parent=11 // pred_check
          %p176 = pneg %p55
        $region14: #{glm_mlp.1} parent=11 // pred_check_branch
          %178 = sbr.rel (%p176) target = $region16
        $region15: #{glm_mlp.1} parent=11 // pred_region
          %s179 = smul.u32 3, %s26
          %p180 = scmp.lt.s32.totalorder %s179, 2
          %s181 = scalar_select %p180, %s179, 2
          %s182 = smul.addr %s181, 8
          %s183 = scalar_lea.vmem %s0, %s182
          %s184 = smul.u32 3, %s26
        $region16: #{glm_mlp.1} parent=11 // pred_fallthru
          _
      $region12: #{glm_mlp.1} parent=5 // pred_fallthru
        _
      %p185 = scmp.lt.s32.totalorder %s17, 2
      // Predicated region
      $region17: #{glm_mlp.1} parent=5 // pred_check
        %p186 = pneg %p185
      $region18: #{glm_mlp.1} parent=5 // pred_check_branch
        %188 = sbr.rel (%p186) target = $region20
      $region19: #{glm_mlp.1} parent=5 // pred_region
        // Predicated region
        $region21: #{glm_mlp.1} parent=19 // pred_check
          %p189 = pneg %p75
        $region22: #{glm_mlp.1} parent=19 // pred_check_branch
          %191 = sbr.rel (%p189) target = $region24
        $region23: #{glm_mlp.1} parent=19 // pred_region
          %s192 = sand.u32 %s65, 1
          %s193 = scalar_lea.sflag [#allocation4], %s192
          %s194 = sand.u32 %s65, 1
          %s195 = smul.addr %s194, 256
          %s196 = scalar_lea.vmem [#allocation3], %s195
          %s197 = smul.u32 2, %s25
          %s199 = ssub.s32 4096, 4096
          %200 = vsyncadd %s193, %s199
          %s201 = smul.addr %s197, 128
          %s202 = scalar_lea.hbm %s1, %s201
          %s203 = sshll.u32 %s196, 4
          %s204 = int_to_ptr.vmem [resolvable:$true] %s203
          %209 = dma.hbm_to_vmem [thread:$0]  %s202, 4096, %s204, %s193, 1024, 256, 16
        $region24: #{glm_mlp.1} parent=19 // pred_fallthru
          _
        // Predicated region
        $region25: #{glm_mlp.1} parent=19 // pred_check
          %p210 = pneg %p103
        $region26: #{glm_mlp.1} parent=19 // pred_check_branch
          %212 = sbr.rel (%p210) target = $region28
        $region27: #{glm_mlp.1} parent=19 // pred_region
          %s213 = sand.u32 %s17, 1
          %s214 = scalar_lea.sflag [#allocation7], %s213
          %s215 = sand.u32 %s93, 1
          %s216 = smul.addr %s215, 256
          %s217 = scalar_lea.vmem [#allocation6], %s216
          %s218 = sadd.s32 %s25, 2
          %s219 = smul.u32 2, %s218
          %s221 = ssub.s32 4096, 4096
          %222 = vsyncadd %s214, %s221
          %s223 = smul.addr %s219, 128
          %s224 = scalar_lea.hbm %s2, %s223
          %s225 = sshll.u32 %s217, 4
          %s226 = int_to_ptr.vmem [resolvable:$true] %s225
          %231 = dma.hbm_to_vmem [thread:$0]  %s224, 4096, %s226, %s214, 1024, 256, 16
        $region28: #{glm_mlp.1} parent=19 // pred_fallthru
          _
        // Predicated region
        $region29: #{glm_mlp.1} parent=19 // pred_check
          %p232 = pneg %p129
        $region30: #{glm_mlp.1} parent=19 // pred_check_branch
          %234 = sbr.rel (%p232) target = $region32
        $region31: #{glm_mlp.1} parent=19 // pred_region
          %s235 = sand.u32 %s17, 1
          %s236 = scalar_lea.sflag [#allocation7], %s235
          %s237 = sand.u32 %s119, 1
          %s238 = smul.addr %s237, 256
          %s239 = scalar_lea.vmem [#allocation8], %s238
          %s240 = smul.u32 32, %s25
          %s242 = ssub.s32 4096, 4096
          %243 = vsyncadd %s236, %s242
          %s244 = smul.addr %s240, 128
          %s245 = scalar_lea.hbm %s3, %s244
          %s246 = sshll.u32 %s239, 4
          %s247 = int_to_ptr.vmem [resolvable:$true] %s246
          %252 = dma.hbm_to_vmem [thread:$0]  %s245, 4096, %s247, %s236, 128, 128, 8
        $region32: #{glm_mlp.1} parent=19 // pred_fallthru
          _
      $region20: #{glm_mlp.1} parent=5 // pred_fallthru
        _
      %p253 = scmp.le.s32.totalorder 1, %s17
      %p254 = scmp.lt.s32.totalorder %s17, 3
      %p255 = pnand %p253, %p254
      %p256 = pneg %p255
      // Predicated region
      $region33: #{glm_mlp.1} parent=5 // pred_check
        _
      $region34: #{glm_mlp.1} parent=5 // pred_check_branch
        %258 = sbr.rel (%p255) target = $region36
      $region35: #{glm_mlp.1} parent=5 // pred_region
        %s259 = ssub.s32 %s17, 1
        %s260 = sand.u32 %s68, 1
        %s261 = scalar_lea.sflag [#allocation4], %s260
        %s262 = sand.u32 %s68, 1
        %s263 = smul.addr %s262, 256
        %s264 = scalar_lea.vmem [#allocation3], %s263
        // Predicated region
        $region37: #{glm_mlp.1} parent=35 // pred_check
          %p265 = pneg %p81
        $region38: #{glm_mlp.1} parent=35 // pred_check_branch
          %267 = sbr.rel (%p265) target = $region40
        $region39: #{glm_mlp.1} parent=35 // pred_region
          %268 = dma.done %s261, 4096
        $region40: #{glm_mlp.1} parent=35 // pred_fallthru
          _
        %s269 = sand.u32 %s22, 1
        %s270 = scalar_lea.sflag [#allocation7], %s269
        %s271 = sand.u32 %s96, 1
        %s272 = smul.addr %s271, 256
        %s273 = scalar_lea.vmem [#allocation6], %s272
        // Predicated region
        $region41: #{glm_mlp.1} parent=35 // pred_check
          %p274 = pneg %p109
        $region42: #{glm_mlp.1} parent=35 // pred_check_branch
          %276 = sbr.rel (%p274) target = $region44
        $region43: #{glm_mlp.1} parent=35 // pred_region
          %277 = dma.done %s270, 4096
        $region44: #{glm_mlp.1} parent=35 // pred_fallthru
          _
        %s278 = sand.u32 %s22, 1
        %s279 = scalar_lea.sflag [#allocation7], %s278
        %s280 = sand.u32 %s122, 1
        %s281 = smul.addr %s280, 256
        %s282 = scalar_lea.vmem [#allocation8], %s281
        // Predicated region
        $region45: #{glm_mlp.1} parent=35 // pred_check
          %p283 = pneg %p135
        $region46: #{glm_mlp.1} parent=35 // pred_check_branch
          %285 = sbr.rel (%p283) target = $region48
        $region47: #{glm_mlp.1} parent=35 // pred_region
          %286 = dma.done %s279, 4096
        $region48: #{glm_mlp.1} parent=35 // pred_fallthru
          _
        %s287 = smul.u32 3, %s26
        %p288 = scmp.lt.s32.totalorder %s287, 2
        %s289 = scalar_select %p288, %s287, 2
        %s290 = smul.addr %s289, 8
        %s291 = scalar_lea.vmem %s0, %s290
        %p292 = pneg %p55
        %p293 = pneg %p52
        %s294 = sand.u32 %s68, 1
        %s295 = scalar_lea.sflag [#allocation4], %s294
        %s296 = sand.u32 %s68, 1
        %s297 = smul.addr %s296, 256
        %s298 = scalar_lea.vmem [#allocation3], %s297
        %p299 = pneg %p81
        %p300 = pneg %p78
        %s301 = sand.u32 %s22, 1
        %s302 = scalar_lea.sflag [#allocation7], %s301
        %s303 = sand.u32 %s96, 1
        %s304 = smul.addr %s303, 256
        %s305 = scalar_lea.vmem [#allocation6], %s304
        %p306 = pneg %p109
        %p307 = pneg %p106
        %s308 = sand.u32 %s22, 1
        %s309 = scalar_lea.sflag [#allocation7], %s308
        %s310 = sand.u32 %s122, 1
        %s311 = smul.addr %s310, 256
        %s312 = scalar_lea.vmem [#allocation8], %s311
        %p313 = pneg %p135
        %p314 = pneg %p132
        %p315 = pneg %p161
        %p316 = pneg %p158
        %s317 = smul.u32 3, %s26
        %p318 = scmp.lt.s32.totalorder %s317, 2
        %s319 = scalar_select %p318, %s317, 2
        %s320 = smul.addr %s319, 8
        %s321 = scalar_lea.vmem %s0, %s320
        %s322 = smul.u32 3, %s26
        %s323 = smul.u32 2, %s27
        %s324 = sadd.s32 %s27, 2
        %s325 = smul.u32 2, %s324
        %s326 = smul.u32 32, %s27
        %s327 = smul.u32 3, %s26
        %p328 = scmp.eq.s32.totalorder %s27, 0
        // Predicated region
        $region49: #{glm_mlp.1} parent=35 // pred_check
          %p329 = pneg %p328
        $region50: #{glm_mlp.1} parent=35 // pred_check_branch
          %331 = sbr.rel (%p329) target = $region52
        $region51: #{glm_mlp.1} parent=35 // pred_region
          %332 = vst [vmem:[#allocation2] sm:$0xff] 0.0
          %333 = vst [vmem:[#allocation2 + $0x8] sm:$0xff] 0.0
          %334 = vst [vmem:[#allocation2 + $0x10] sm:$0xff] 0.0
        $region52: #{glm_mlp.1} parent=35 // pred_fallthru
          _
        %v335 = vld [vmem:[%s321] sm:$0xff]
        %v336 = vld [vmem:[%s321 + $0x8] sm:$0xff]
        %v337 = vld [vmem:[%s321 + $0x10] sm:$0xff]
        %v338 = vld [vmem:[%s264] sm:$0xff]
        %v339 = vld [vmem:[%s264 + $0x8] sm:$0xff]
        %v340 = vld [vmem:[%s264 + $0x10] sm:$0xff]
        %v341 = vld [vmem:[%s264 + $0x18] sm:$0xff]
        %v342 = vld [vmem:[%s264 + $0x20] sm:$0xff]
        %v343 = vld [vmem:[%s264 + $0x28] sm:$0xff]
        %v344 = vld [vmem:[%s264 + $0x30] sm:$0xff]
        %v345 = vld [vmem:[%s264 + $0x38] sm:$0xff]
        %v346 = vld [vmem:[%s264 + $0x40] sm:$0xff]
        %v347 = vld [vmem:[%s264 + $0x48] sm:$0xff]
        %v348 = vld [vmem:[%s264 + $0x50] sm:$0xff]
        %v349 = vld [vmem:[%s264 + $0x58] sm:$0xff]
        %v350 = vld [vmem:[%s264 + $0x60] sm:$0xff]
        %v351 = vld [vmem:[%s264 + $0x68] sm:$0xff]
        %v352 = vld [vmem:[%s264 + $0x70] sm:$0xff]
        %v353 = vld [vmem:[%s264 + $0x78] sm:$0xff]
        %v354 = vld [vmem:[%s264 + $0x80] sm:$0xff]
        %v355 = vld [vmem:[%s264 + $0x88] sm:$0xff]
        %v356 = vld [vmem:[%s264 + $0x90] sm:$0xff]
        %v357 = vld [vmem:[%s264 + $0x98] sm:$0xff]
        %v358 = vld [vmem:[%s264 + $0xa0] sm:$0xff]
        %v359 = vld [vmem:[%s264 + $0xa8] sm:$0xff]
        %v360 = vld [vmem:[%s264 + $0xb0] sm:$0xff]
        %v361 = vld [vmem:[%s264 + $0xb8] sm:$0xff]
        %v362 = vld [vmem:[%s264 + $0xc0] sm:$0xff]
        %v363 = vld [vmem:[%s264 + $0xc8] sm:$0xff]
        %v364 = vld [vmem:[%s264 + $0xd0] sm:$0xff]
        %v365 = vld [vmem:[%s264 + $0xd8] sm:$0xff]
        %v366 = vld [vmem:[%s264 + $0xe0] sm:$0xff]
        %v367 = vld [vmem:[%s264 + $0xe8] sm:$0xff]
        %v368 = vld [vmem:[%s264 + $0xf0] sm:$0xff]
        %v369 = vld [vmem:[%s264 + $0xf8] sm:$0xff]
        %370 = vmatprep.subr.mxu0 %v369
        %371 = vmatpush1.msra.mxu0 %v368
        %372 = vmatprep.subr.mxu0 %v367
        %373 = vmatpush1.msra.mxu0 %v366
        %374 = vmatprep.subr.mxu0 %v365
        %375 = vmatpush1.msra.mxu0 %v364
        %376 = vmatprep.subr.mxu0 %v363
        %377 = vmatpush1.msra.mxu0 %v362
        %378 = vmatprep.subr.mxu0 %v361
        %379 = vmatpush1.msra.mxu0 %v360
        %380 = vmatprep.subr.mxu0 %v359
        %381 = vmatpush1.msra.mxu0 %v358
        %382 = vmatprep.subr.mxu0 %v357
        %383 = vmatpush1.msra.mxu0 %v356
        %384 = vmatprep.subr.mxu0 %v355
        %385 = vmatpush1.msra.mxu0 %v354
        %386 = vmatprep.subr.mxu0 %v353
        %387 = vmatpush1.msra.mxu0 %v352
        %388 = vmatprep.subr.mxu0 %v351
        %389 = vmatpush1.msra.mxu0 %v350
        %390 = vmatprep.subr.mxu0 %v349
        %391 = vmatpush1.msra.mxu0 %v348
        %392 = vmatprep.subr.mxu0 %v347
        %393 = vmatpush1.msra.mxu0 %v346
        %394 = vmatprep.subr.mxu0 %v345
        %395 = vmatpush1.msra.mxu0 %v344
        %396 = vmatprep.subr.mxu0 %v343
        %397 = vmatpush1.msra.mxu0 %v342
        %398 = vmatprep.subr.mxu0 %v341
        %399 = vmatpush1.msra.mxu0 %v340
        %400 = vmatprep.subr.mxu0 %v339
        %401 = vmatpush1.msra.mxu0 %v338
        %402 = vmatprep.subr.mxu0 0.0
        %403 = vmatpush2.msra.mxu0 0.0
        %404 = vmatprep.subr.mxu0 0.0
        %405 = vmatpush2.msra.mxu0 0.0
        %406 = vmatprep.subr.mxu0 0.0
        %407 = vmatpush2.msra.mxu0 0.0
        %408 = vmatprep.subr.mxu0 0.0
        %409 = vmatpush2.msra.mxu0 0.0
        %410 = vmatprep.subr.mxu0 0.0
        %411 = vmatpush2.msra.mxu0 0.0
        %412 = vmatprep.subr.mxu0 0.0
        %413 = vmatpush2.msra.mxu0 0.0
        %414 = vmatprep.subr.mxu0 0.0
        %415 = vmatpush2.msra.mxu0 0.0
        %416 = vmatprep.subr.mxu0 0.0
        %417 = vmatpush2.msra.mxu0 0.0
        %418 = vmatprep.subr.mxu0 0.0
        %419 = vmatpush2.msra.mxu0 0.0
        %420 = vmatprep.subr.mxu0 0.0
        %421 = vmatpush2.msra.mxu0 0.0
        %422 = vmatprep.subr.mxu0 0.0
        %423 = vmatpush2.msra.mxu0 0.0
        %424 = vmatprep.subr.mxu0 0.0
        %425 = vmatpush2.msra.mxu0 0.0
        %426 = vmatprep.subr.mxu0 0.0
        %427 = vmatpush2.msra.mxu0 0.0
        %428 = vmatprep.subr.mxu0 0.0
        %429 = vmatpush2.msra.mxu0 0.0
        %430 = vmatprep.subr.mxu0 0.0
        %431 = vmatpush2.msra.mxu0 0.0
        %432 = vmatprep.subr.mxu0 0.0
        %433 = vmatpush2.msra.mxu0 0.0
        %434 = vmatprep.mubr.f32.mxu0 0.0
        %435 = vmatmul.mubr.f32.gmra.mxu0 %v335
        %v436 = vpop.f32.mrf.mxu0
        %v437 = vadd.f32 0.0, %v436
        %v438 = vpop.f32.mrf.mxu0
        %v439 = vadd.f32 0.0, %v438
        %440 = vmatprep.mubr.f32.mxu0 0.0
        %441 = vmatmul.mubr.f32.gmra.mxu0 %v336
        %v442 = vpop.f32.mrf.mxu0
        %v443 = vadd.f32 0.0, %v442
        %v444 = vpop.f32.mrf.mxu0
        %v445 = vadd.f32 0.0, %v444
        %446 = vmatprep.mubr.f32.mxu0 0.0
        %447 = vmatmul.mubr.f32.gmra.mxu0 %v337
        %v448 = vpop.f32.mrf.mxu0
        %v449 = vadd.f32 0.0, %v448
        %v450 = vpop.f32.mrf.mxu0
        %v451 = vadd.f32 0.0, %v450
        %452 = vdwg.mxu0
        %v453 = vld [vmem:[%s273] sm:$0xff]
        %v454 = vld [vmem:[%s273 + $0x8] sm:$0xff]
        %v455 = vld [vmem:[%s273 + $0x10] sm:$0xff]
        %v456 = vld [vmem:[%s273 + $0x18] sm:$0xff]
        %v457 = vld [vmem:[%s273 + $0x20] sm:$0xff]
        %v458 = vld [vmem:[%s273 + $0x28] sm:$0xff]
        %v459 = vld [vmem:[%s273 + $0x30] sm:$0xff]
        %v460 = vld [vmem:[%s273 + $0x38] sm:$0xff]
        %v461 = vld [vmem:[%s273 + $0x40] sm:$0xff]
        %v462 = vld [vmem:[%s273 + $0x48] sm:$0xff]
        %v463 = vld [vmem:[%s273 + $0x50] sm:$0xff]
        %v464 = vld [vmem:[%s273 + $0x58] sm:$0xff]
        %v465 = vld [vmem:[%s273 + $0x60] sm:$0xff]
        %v466 = vld [vmem:[%s273 + $0x68] sm:$0xff]
        %v467 = vld [vmem:[%s273 + $0x70] sm:$0xff]
        %v468 = vld [vmem:[%s273 + $0x78] sm:$0xff]
        %v469 = vld [vmem:[%s273 + $0x80] sm:$0xff]
        %v470 = vld [vmem:[%s273 + $0x88] sm:$0xff]
        %v471 = vld [vmem:[%s273 + $0x90] sm:$0xff]
        %v472 = vld [vmem:[%s273 + $0x98] sm:$0xff]
        %v473 = vld [vmem:[%s273 + $0xa0] sm:$0xff]
        %v474 = vld [vmem:[%s273 + $0xa8] sm:$0xff]
        %v475 = vld [vmem:[%s273 + $0xb0] sm:$0xff]
        %v476 = vld [vmem:[%s273 + $0xb8] sm:$0xff]
        %v477 = vld [vmem:[%s273 + $0xc0] sm:$0xff]
        %v478 = vld [vmem:[%s273 + $0xc8] sm:$0xff]
        %v479 = vld [vmem:[%s273 + $0xd0] sm:$0xff]
        %v480 = vld [vmem:[%s273 + $0xd8] sm:$0xff]
        %v481 = vld [vmem:[%s273 + $0xe0] sm:$0xff]
        %v482 = vld [vmem:[%s273 + $0xe8] sm:$0xff]
        %v483 = vld [vmem:[%s273 + $0xf0] sm:$0xff]
        %v484 = vld [vmem:[%s273 + $0xf8] sm:$0xff]
        %485 = vmatprep.subr.mxu0 %v484
        %486 = vmatpush1.msra.mxu0 %v483
        %487 = vmatprep.subr.mxu0 %v482
        %488 = vmatpush1.msra.mxu0 %v481
        %489 = vmatprep.subr.mxu0 %v480
        %490 = vmatpush1.msra.mxu0 %v479
        %491 = vmatprep.subr.mxu0 %v478
        %492 = vmatpush1.msra.mxu0 %v477
        %493 = vmatprep.subr.mxu0 %v476
        %494 = vmatpush1.msra.mxu0 %v475
        %495 = vmatprep.subr.mxu0 %v474
        %496 = vmatpush1.msra.mxu0 %v473
        %497 = vmatprep.subr.mxu0 %v472
        %498 = vmatpush1.msra.mxu0 %v471
        %499 = vmatprep.subr.mxu0 %v470
        %500 = vmatpush1.msra.mxu0 %v469
        %501 = vmatprep.subr.mxu0 %v468
        %502 = vmatpush1.msra.mxu0 %v467
        %503 = vmatprep.subr.mxu0 %v466
        %504 = vmatpush1.msra.mxu0 %v465
        %505 = vmatprep.subr.mxu0 %v464
        %506 = vmatpush1.msra.mxu0 %v463
        %507 = vmatprep.subr.mxu0 %v462
        %508 = vmatpush1.msra.mxu0 %v461
        %509 = vmatprep.subr.mxu0 %v460
        %510 = vmatpush1.msra.mxu0 %v459
        %511 = vmatprep.subr.mxu0 %v458
        %512 = vmatpush1.msra.mxu0 %v457
        %513 = vmatprep.subr.mxu0 %v456
        %514 = vmatpush1.msra.mxu0 %v455
        %515 = vmatprep.subr.mxu0 %v454
        %516 = vmatpush1.msra.mxu0 %v453
        %517 = vmatprep.subr.mxu0 0.0
        %518 = vmatpush2.msra.mxu0 0.0
        %519 = vmatprep.subr.mxu0 0.0
        %520 = vmatpush2.msra.mxu0 0.0
        %521 = vmatprep.subr.mxu0 0.0
        %522 = vmatpush2.msra.mxu0 0.0
        %523 = vmatprep.subr.mxu0 0.0
        %524 = vmatpush2.msra.mxu0 0.0
        %525 = vmatprep.subr.mxu0 0.0
        %526 = vmatpush2.msra.mxu0 0.0
        %527 = vmatprep.subr.mxu0 0.0
        %528 = vmatpush2.msra.mxu0 0.0
        %529 = vmatprep.subr.mxu0 0.0
        %530 = vmatpush2.msra.mxu0 0.0
        %531 = vmatprep.subr.mxu0 0.0
        %532 = vmatpush2.msra.mxu0 0.0
        %533 = vmatprep.subr.mxu0 0.0
        %534 = vmatpush2.msra.mxu0 0.0
        %535 = vmatprep.subr.mxu0 0.0
        %536 = vmatpush2.msra.mxu0 0.0
        %537 = vmatprep.subr.mxu0 0.0
        %538 = vmatpush2.msra.mxu0 0.0
        %539 = vmatprep.subr.mxu0 0.0
        %540 = vmatpush2.msra.mxu0 0.0
        %541 = vmatprep.subr.mxu0 0.0
        %542 = vmatpush2.msra.mxu0 0.0
        %543 = vmatprep.subr.mxu0 0.0
        %544 = vmatpush2.msra.mxu0 0.0
        %545 = vmatprep.subr.mxu0 0.0
        %546 = vmatpush2.msra.mxu0 0.0
        %547 = vmatprep.subr.mxu0 0.0
        %548 = vmatpush2.msra.mxu0 0.0
        %549 = vmatprep.mubr.f32.mxu0 0.0
        %550 = vmatmul.mubr.f32.gmra.mxu0 %v335
        %v551 = vpop.f32.mrf.mxu0
        %v552 = vadd.f32 0.0, %v551
        %v553 = vpop.f32.mrf.mxu0
        %v554 = vadd.f32 0.0, %v553
        %555 = vmatprep.mubr.f32.mxu0 0.0
        %556 = vmatmul.mubr.f32.gmra.mxu0 %v336
        %v557 = vpop.f32.mrf.mxu0
        %v558 = vadd.f32 0.0, %v557
        %v559 = vpop.f32.mrf.mxu0
        %v560 = vadd.f32 0.0, %v559
        %561 = vmatprep.mubr.f32.mxu0 0.0
        %562 = vmatmul.mubr.f32.gmra.mxu0 %v337
        %v563 = vpop.f32.mrf.mxu0
        %v564 = vadd.f32 0.0, %v563
        %v565 = vpop.f32.mrf.mxu0
        %v566 = vadd.f32 0.0, %v565
        %567 = vdwg.mxu0
        %v568 = vxor.u32 %v437, 2147483648
        %v569 = vxor.u32 %v439, 2147483648
        %v570 = vxor.u32 %v443, 2147483648
        %v571 = vxor.u32 %v445, 2147483648
        %v572 = vxor.u32 %v449, 2147483648
        %v573 = vxor.u32 %v451, 2147483648
        %v574 = vmul.f32 %v568, 1.442695
        %v575 = vpow.pop %v574
        %v576 = vmul.f32 %v569, 1.442695
        %v577 = vpow.pop %v576
        %v578 = vmul.f32 %v570, 1.442695
        %v579 = vpow.pop %v578
        %v580 = vmul.f32 %v571, 1.442695
        %v581 = vpow.pop %v580
        %v582 = vmul.f32 %v572, 1.442695
        %v583 = vpow.pop %v582
        %v584 = vmul.f32 %v573, 1.442695
        %v585 = vpow.pop %v584
        %v586 = vadd.f32 %v575, 1.0
        %v587 = vadd.f32 %v577, 1.0
        %v588 = vadd.f32 %v579, 1.0
        %v589 = vadd.f32 %v581, 1.0
        %v590 = vadd.f32 %v583, 1.0
        %v591 = vadd.f32 %v585, 1.0
        %v592 = vrcp.pop %v586
        %v593 = vmul.f32 1.0, %v592
        %v594 = vrcp.pop %v587
        %v595 = vmul.f32 1.0, %v594
        %v596 = vrcp.pop %v588
        %v597 = vmul.f32 1.0, %v596
        %v598 = vrcp.pop %v589
        %v599 = vmul.f32 1.0, %v598
        %v600 = vrcp.pop %v590
        %v601 = vmul.f32 1.0, %v600
        %v602 = vrcp.pop %v591
        %v603 = vmul.f32 1.0, %v602
        %v604 = vmul.f32 %v437, %v593
        %v605 = vmul.f32 %v439, %v595
        %v606 = vmul.f32 %v443, %v597
        %v607 = vmul.f32 %v445, %v599
        %v608 = vmul.f32 %v449, %v601
        %v609 = vmul.f32 %v451, %v603
        %v610 = vmul.f32 %v604, %v552
        %v611 = vmul.f32 %v605, %v554
        %v612 = vmul.f32 %v606, %v558
        %v613 = vmul.f32 %v607, %v560
        %v614 = vmul.f32 %v608, %v564
        %v615 = vmul.f32 %v609, %v566
        %v616 = vld [vmem:[#allocation2] sm:$0xff]
        %v617 = vld [vmem:[#allocation2 + $0x8] sm:$0xff]
        %v618 = vld [vmem:[#allocation2 + $0x10] sm:$0xff]
        %v619 = vld [vmem:[%s282] sm:$0xff]
        %v620 = vld [vmem:[%s282 + $0x8] sm:$0xff]
        %v621 = vld [vmem:[%s282 + $0x10] sm:$0xff]
        %v622 = vld [vmem:[%s282 + $0x18] sm:$0xff]
        %v623 = vld [vmem:[%s282 + $0x20] sm:$0xff]
        %v624 = vld [vmem:[%s282 + $0x28] sm:$0xff]
        %v625 = vld [vmem:[%s282 + $0x30] sm:$0xff]
        %v626 = vld [vmem:[%s282 + $0x38] sm:$0xff]
        %v627 = vld [vmem:[%s282 + $0x40] sm:$0xff]
        %v628 = vld [vmem:[%s282 + $0x48] sm:$0xff]
        %v629 = vld [vmem:[%s282 + $0x50] sm:$0xff]
        %v630 = vld [vmem:[%s282 + $0x58] sm:$0xff]
        %v631 = vld [vmem:[%s282 + $0x60] sm:$0xff]
        %v632 = vld [vmem:[%s282 + $0x68] sm:$0xff]
        %v633 = vld [vmem:[%s282 + $0x70] sm:$0xff]
        %v634 = vld [vmem:[%s282 + $0x78] sm:$0xff]
        %v635 = vld [vmem:[%s282 + $0x80] sm:$0xff]
        %v636 = vld [vmem:[%s282 + $0x88] sm:$0xff]
        %v637 = vld [vmem:[%s282 + $0x90] sm:$0xff]
        %v638 = vld [vmem:[%s282 + $0x98] sm:$0xff]
        %v639 = vld [vmem:[%s282 + $0xa0] sm:$0xff]
        %v640 = vld [vmem:[%s282 + $0xa8] sm:$0xff]
        %v641 = vld [vmem:[%s282 + $0xb0] sm:$0xff]
        %v642 = vld [vmem:[%s282 + $0xb8] sm:$0xff]
        %v643 = vld [vmem:[%s282 + $0xc0] sm:$0xff]
        %v644 = vld [vmem:[%s282 + $0xc8] sm:$0xff]
        %v645 = vld [vmem:[%s282 + $0xd0] sm:$0xff]
        %v646 = vld [vmem:[%s282 + $0xd8] sm:$0xff]
        %v647 = vld [vmem:[%s282 + $0xe0] sm:$0xff]
        %v648 = vld [vmem:[%s282 + $0xe8] sm:$0xff]
        %v649 = vld [vmem:[%s282 + $0xf0] sm:$0xff]
        %v650 = vld [vmem:[%s282 + $0xf8] sm:$0xff]
        %651 = vmatprep.subr.mxu0 0.0
        %652 = vmatpush1.msra.mxu0 %v634
        %653 = vmatprep.subr.mxu0 0.0
        %654 = vmatpush1.msra.mxu0 %v633
        %655 = vmatprep.subr.mxu0 0.0
        %656 = vmatpush1.msra.mxu0 %v632
        %657 = vmatprep.subr.mxu0 0.0
        %658 = vmatpush1.msra.mxu0 %v631
        %659 = vmatprep.subr.mxu0 0.0
        %660 = vmatpush1.msra.mxu0 %v630
        %661 = vmatprep.subr.mxu0 0.0
        %662 = vmatpush1.msra.mxu0 %v629
        %663 = vmatprep.subr.mxu0 0.0
        %664 = vmatpush1.msra.mxu0 %v628
        %665 = vmatprep.subr.mxu0 0.0
        %666 = vmatpush1.msra.mxu0 %v627
        %667 = vmatprep.subr.mxu0 0.0
        %668 = vmatpush1.msra.mxu0 %v626
        %669 = vmatprep.subr.mxu0 0.0
        %670 = vmatpush1.msra.mxu0 %v625
        %671 = vmatprep.subr.mxu0 0.0
        %672 = vmatpush1.msra.mxu0 %v624
        %673 = vmatprep.subr.mxu0 0.0
        %674 = vmatpush1.msra.mxu0 %v623
        %675 = vmatprep.subr.mxu0 0.0
        %676 = vmatpush1.msra.mxu0 %v622
        %677 = vmatprep.subr.mxu0 0.0
        %678 = vmatpush1.msra.mxu0 %v621
        %679 = vmatprep.subr.mxu0 0.0
        %680 = vmatpush1.msra.mxu0 %v620
        %681 = vmatprep.subr.mxu0 0.0
        %682 = vmatpush1.msra.mxu0 %v619
        %683 = vmatprep.subr.mxu0 0.0
        %684 = vmatpush2.msra.mxu0 %v650
        %685 = vmatprep.subr.mxu0 0.0
        %686 = vmatpush2.msra.mxu0 %v649
        %687 = vmatprep.subr.mxu0 0.0
        %688 = vmatpush2.msra.mxu0 %v648
        %689 = vmatprep.subr.mxu0 0.0
        %690 = vmatpush2.msra.mxu0 %v647
        %691 = vmatprep.subr.mxu0 0.0
        %692 = vmatpush2.msra.mxu0 %v646
        %693 = vmatprep.subr.mxu0 0.0
        %694 = vmatpush2.msra.mxu0 %v645
        %695 = vmatprep.subr.mxu0 0.0
        %696 = vmatpush2.msra.mxu0 %v644
        %697 = vmatprep.subr.mxu0 0.0
        %698 = vmatpush2.msra.mxu0 %v643
        %699 = vmatprep.subr.mxu0 0.0
        %700 = vmatpush2.msra.mxu0 %v642
        %701 = vmatprep.subr.mxu0 0.0
        %702 = vmatpush2.msra.mxu0 %v641
        %703 = vmatprep.subr.mxu0 0.0
        %704 = vmatpush2.msra.mxu0 %v640
        %705 = vmatprep.subr.mxu0 0.0
        %706 = vmatpush2.msra.mxu0 %v639
        %707 = vmatprep.subr.mxu0 0.0
        %708 = vmatpush2.msra.mxu0 %v638
        %709 = vmatprep.subr.mxu0 0.0
        %710 = vmatpush2.msra.mxu0 %v637
        %711 = vmatprep.subr.mxu0 0.0
        %712 = vmatpush2.msra.mxu0 %v636
        %713 = vmatprep.subr.mxu0 0.0
        %714 = vmatpush2.msra.mxu0 %v635
        %715 = vmatprep.mubr.f32.mxu0 %v611
        %716 = vmatmul.mubr.f32.gmra.mxu0 %v610
        %v717 = vpop.f32.mrf.mxu0
        %v718 = vadd.f32 0.0, %v717
        %v719 = vpop.f32.mrf.mxu0
        %720 = vmatprep.mubr.f32.mxu0 %v613
        %721 = vmatmul.mubr.f32.gmra.mxu0 %v612
        %v722 = vpop.f32.mrf.mxu0
        %v723 = vadd.f32 0.0, %v722
        %v724 = vpop.f32.mrf.mxu0
        %725 = vmatprep.mubr.f32.mxu0 %v615
        %726 = vmatmul.mubr.f32.gmra.mxu0 %v614
        %v727 = vpop.f32.mrf.mxu0
        %v728 = vadd.f32 0.0, %v727
        %v729 = vpop.f32.mrf.mxu0
        %730 = vdwg.mxu0
        %v731 = vadd.f32 %v616, %v718
        %v732 = vadd.f32 %v617, %v723
        %v733 = vadd.f32 %v618, %v728
        %734 = vst [vmem:[#allocation2] sm:$0xff] %v731
        %735 = vst [vmem:[#allocation2 + $0x8] sm:$0xff] %v732
        %736 = vst [vmem:[#allocation2 + $0x10] sm:$0xff] %v733
        %p737 = scmp.eq.s32.totalorder %s27, 1
        // Predicated region
        $region53: #{glm_mlp.1} parent=35 // pred_check
          %p738 = pneg %p737
        $region54: #{glm_mlp.1} parent=35 // pred_check_branch
          %740 = sbr.rel (%p738) target = $region56
        $region55: #{glm_mlp.1} parent=35 // pred_region
          %v741 = vld [vmem:[#allocation2] sm:$0xff]
          %v742 = vld [vmem:[#allocation2 + $0x8] sm:$0xff]
          %v743 = vld [vmem:[#allocation2 + $0x10] sm:$0xff]
          %744 = vst [vmem:[#allocation9] sm:$0xff] %v741
          %745 = vst [vmem:[#allocation9 + $0x8] sm:$0xff] %v742
          %746 = vst [vmem:[#allocation9 + $0x10] sm:$0xff] %v743
        $region56: #{glm_mlp.1} parent=35 // pred_fallthru
          _
        // Predicated region
        $region57: #{glm_mlp.1} parent=35 // pred_check
          %p747 = pneg %p158
        $region58: #{glm_mlp.1} parent=35 // pred_check_branch
          %749 = sbr.rel (%p747) target = $region60
        $region59: #{glm_mlp.1} parent=35 // pred_region
          %s750 = smul.u32 3, %s26
          %s752 = ssub.s32 384, 384
          %753 = vsyncadd [#allocation5], %s752
          %s754 = smul.addr %s750, 128
          %s755 = scalar_lea.hbm %s4, %s754
          %s756 = sshll.u32 [#allocation9], 4
          %s757 = int_to_ptr.vmem [resolvable:$true] %s756
          %762 = dma.vmem_to_hbm [thread:$0]  %s757, 384, %s755, [#allocation5], 128, 128, 8
        $region60: #{glm_mlp.1} parent=35 // pred_fallthru
          _
        // Predicated region
        $region61: #{glm_mlp.1} parent=35 // pred_check
          %p763 = pneg %p158
        $region62: #{glm_mlp.1} parent=35 // pred_check_branch
          %765 = sbr.rel (%p763) target = $region64
        $region63: #{glm_mlp.1} parent=35 // pred_region
          %766 = dma.done [#allocation5], 384
        $region64: #{glm_mlp.1} parent=35 // pred_fallthru
          _
      $region36: #{glm_mlp.1} parent=5 // pred_fallthru
        _
      %p767 = scmp.le.s32.totalorder 2, %s17
      // Predicated region
      $region65: #{glm_mlp.1} parent=5 // pred_check
        %p768 = pneg %p767
      $region66: #{glm_mlp.1} parent=5 // pred_check_branch
        %770 = sbr.rel (%p768) target = $region68
      $region67: #{glm_mlp.1} parent=5 // pred_region
        %s771 = ssub.s32 %s17, 2
      $region68: #{glm_mlp.1} parent=5 // pred_fallthru
        _
    $region6: #{glm_mlp.1} parent=1 // loop_footer
      %s21 = sadd.s32 1, %s17
    $region7: #{glm_mlp.1} parent=1 // loop_footer_branch
      %16 = sbr.rel target = $region3
    $region8: #{glm_mlp.1} parent=1 // loop_exit
      _
    %772 = vsyncpa [#allocation4], 1
    %s773 = scalar_lea.sflag [#allocation4], 1
    %774 = vsyncpa %s773, 1
    %775 = vsyncpa [#allocation7], 1
    %s776 = scalar_lea.sflag [#allocation7], 1
    %777 = vsyncpa %s776, 1
    %778 = vsyncpa [#allocation5], 1
    %s779 = scalar_lea.sflag [#allocation5], 1
    %780 = vsyncpa %s779, 1

</llo_original>
